<compile_context>
chip_gen: v7x
topology: tpu7x:2x2x1
jax: 0.10.0
libtpu: 0.0.40
codegen_flags: <defaults>
</compile_context>

<pallas_src>
import jax
import jax.numpy as jnp
from jax.experimental import pallas as pl
from jax.experimental.pallas import tpu as pltpu


def skipgram_kernel(ids_ref, emb_hbm, w_ref, b_ref, out_ref, emb_vmem, gather_sem):
    # ids_ref  : (B,)   int32  SMEM (scalar prefetch)
    # emb_hbm  : (V, D) f32    HBM  (raw ref, manual DMA)
    # w_ref    : (D, TN) f32   VMEM tile of W_out_T
    # b_ref    : (1, TN) f32   VMEM tile of bias
    # out_ref  : (B, TN) f32   VMEM tile of output
    # emb_vmem : (B, D)  f32   VMEM scratch (gathered embedding rows)
    # gather_sem : DMA semaphores, one per batch row
    j = pl.program_id(0)
    B, D = emb_vmem.shape

    # Gather the B embedding rows HBM -> VMEM once (first vocab tile). The
    # scratch persists across the sequential ("arbitrary") vocab grid axis.
    @pl.when(j == 0)
    def _gather():
        copies = []
        for i in range(B):                          # B is static -> unrolled
            row = ids_ref[i]                        # scalar read from SMEM
            cp = pltpu.make_async_copy(
                emb_hbm.at[pl.ds(row, 1), :],       # (1, D) row of the table
                emb_vmem.at[pl.ds(i, 1), :],        # (1, D) row of the scratch
                gather_sem.at[i],
            )
            cp.start()
            copies.append(cp)
        for cp in copies:                           # all DMAs in flight, then wait
            cp.wait()

    # Output projection for this vocab tile: (B, D) @ (D, TN) + (1, TN).
    out_ref[...] = (
        jnp.dot(emb_vmem[...], w_ref[...], preferred_element_type=jnp.float32)
        + b_ref[...]
    )


def _choose_tile_n(V):
    # Prefer lane-dense (multiple-of-128) tiles that evenly divide V, capped so
    # double-buffered weight tiles stay far under the v5e 16 MiB scoped VMEM.
    for tn in (2048, 1024, 512, 256, 128):
        if V % tn == 0:
            return tn
    return V  # small / awkward vocab: single full-width tile


def skipgram_forward(target_word, emb_table, w_out_t, bias, *, tile_n=None):
    """target_word: (B,) int ids. Returns (B, V) float32 logits."""
    B = target_word.shape[0]
    V, D = emb_table.shape
    assert w_out_t.shape == (D, V)

    if tile_n is None:
        tile_n = _choose_tile_n(V)
    assert V % tile_n == 0, "vocab must be divisible by the chosen tile"
    grid = (V // tile_n,)

    # Clamp ids: the in-kernel DMA gather has no bounds check on HBM reads.
    ids = jnp.clip(target_word.astype(jnp.int32), 0, V - 1)
    bias_2d = bias.reshape(1, V).astype(jnp.float32)

    kernel = pl.pallas_call(
        skipgram_kernel,
        out_shape=jax.ShapeDtypeStruct((B, V), jnp.float32),
        grid_spec=pltpu.PrefetchScalarGridSpec(
            num_scalar_prefetch=1,                  # ids -> SMEM, fed to index_maps
            grid=grid,
            in_specs=[
                pl.BlockSpec(memory_space=pl.ANY),                  # embedding table (HBM)
                pl.BlockSpec((D, tile_n), lambda j, ids: (0, j)),   # W_out_T tile
                pl.BlockSpec((1, tile_n), lambda j, ids: (0, j)),   # bias tile
            ],
            out_specs=pl.BlockSpec((B, tile_n), lambda j, ids: (0, j)),
            scratch_shapes=[
                pltpu.VMEM((B, D), jnp.float32),       # gathered embeddings
                pltpu.SemaphoreType.DMA((B,)),         # one sem per gathered row
            ],
        ),
        compiler_params=pltpu.CompilerParams(
            # Sequential so the j==0 gather + persistent scratch is valid; the
            # kernel is HBM-bound, so megacore sharding would gain little.
            dimension_semantics=("arbitrary",),
        ),
        cost_estimate=pl.CostEstimate(
            flops=2 * B * D * V,
            transcendentals=0,
            bytes_accessed=D * V * 4 + B * V * 4 + B * D * 4 + V * 4,
        ),
    )
    return kernel(ids, emb_table, w_out_t, bias_2d)


if __name__ == "__main__":
    # Small shapes consistent with the module; tile_n=128 exercises a
    # multi-step vocab grid (gather at step 0, reuse at step 1).
    vocab_size = 256
    embedding_dim = 32
    batch = 8

    key = jax.random.PRNGKey(0)
    k_emb, k_w, k_b, k_ids = jax.random.split(key, 4)

    # nn.Embedding default init: N(0, 1)
    emb_table = jax.random.normal(k_emb, (vocab_size, embedding_dim), jnp.float32)
    # nn.Linear default init: U(-1/sqrt(in), 1/sqrt(in)); torch weight is (V, D),
    # stored transposed as (D, V) for the kernel.
    bound = 1.0 / (embedding_dim ** 0.5)
    w_out = jax.random.uniform(
        k_w, (vocab_size, embedding_dim), jnp.float32, minval=-bound, maxval=bound
    )
    w_out_t = jnp.transpose(w_out)                  # (D, V)
    bias = jax.random.uniform(
        k_b, (vocab_size,), jnp.float32, minval=-bound, maxval=bound
    )

    target_word = jax.random.randint(k_ids, (batch,), 0, vocab_size, jnp.int32)

    out = skipgram_forward(target_word, emb_table, w_out_t, bias, tile_n=128)
    out = jax.block_until_ready(out)

    # Pure-JAX reference (same semantics as the PyTorch forward).
    ref = emb_table[target_word] @ w_out_t + bias[None, :]
    assert out.shape == (batch, vocab_size)
    assert jnp.allclose(out, ref, atol=1e-5, rtol=1e-5)

    print("KERNEL_OK")
</pallas_src>

<mosaic_0001>
module attributes {stable_mosaic.version = 11 : i64} {
  func.func @skipgram_kernel(%arg0: i32, %arg1: memref<8xi32, #tpu.memory_space<smem>>, %arg2: memref<256x32xf32, #tpu.memory_space<any>>, %arg3: memref<32x128xf32, #tpu.memory_space<vmem>>, %arg4: memref<1x128xf32, #tpu.memory_space<vmem>>, %arg5: memref<8x128xf32, #tpu.memory_space<vmem>>, %arg6: memref<8x32xf32, #tpu.memory_space<vmem>>, %arg7: memref<8x!tpu.dma_semaphore, #tpu.memory_space<semaphore_mem>>) attributes {dimension_semantics = [#tpu.dimension_semantics<arbitrary>], iteration_bounds = array<i64: 2>, scalar_prefetch = 1 : i64, scratch_operands = 2 : i64, tpu.core_type = #tpu.core_type<tc>, window_params = [{}, {transform_indices = @transform_1, window_bounds = array<i64: 32, 128>}, {transform_indices = @transform_2, window_bounds = array<i64: 1, 128>}, {transform_indices = @transform_3, window_bounds = array<i64: 8, 128>}]} {
    %c0_i32 = arith.constant 0 : i32
    %0 = arith.cmpi eq, %arg0, %c0_i32 : i32
    %1 = arith.extui %0 : i1 to i32
    %c0_i32_0 = arith.constant 0 : i32
    %2 = arith.cmpi ne, %1, %c0_i32_0 : i32
    scf.if %2 {
      %c0_8 = arith.constant 0 : index
      %10 = memref.load %arg1[%c0_8] : memref<8xi32, #tpu.memory_space<smem>>
      %c0_i32_9 = arith.constant 0 : i32
      %c0_i32_10 = arith.constant 0 : i32
      %11 = tpu.memref_slice %arg2[%10, %c0_i32_10] : memref<256x32xf32, #tpu.memory_space<any>> -> memref<1x32xf32, #tpu.memory_space<any>>
      %c0_i32_11 = arith.constant 0 : i32
      %c0_i32_12 = arith.constant 0 : i32
      %12 = tpu.memref_slice %arg6[%c0_i32_11, %c0_i32_12] : memref<8x32xf32, #tpu.memory_space<vmem>> -> memref<1x32xf32, #tpu.memory_space<vmem>>
      %13 = tpu.memref_slice %arg7[%c0_i32_9] : memref<8x!tpu.dma_semaphore, #tpu.memory_space<semaphore_mem>> -> memref<1x!tpu.dma_semaphore, #tpu.memory_space<semaphore_mem>>
      %14 = tpu.memref_squeeze %13 : memref<1x!tpu.dma_semaphore, #tpu.memory_space<semaphore_mem>> -> memref<!tpu.dma_semaphore, #tpu.memory_space<semaphore_mem>>
      tpu.enqueue_dma source(%11 : memref<1x32xf32, #tpu.memory_space<any>>) target(%12 : memref<1x32xf32, #tpu.memory_space<vmem>>) target_semaphore(%14 : memref<!tpu.dma_semaphore, #tpu.memory_space<semaphore_mem>>)
      %c1 = arith.constant 1 : index
      %15 = memref.load %arg1[%c1] : memref<8xi32, #tpu.memory_space<smem>>
      %c1_i32 = arith.constant 1 : i32
      %c0_i32_13 = arith.constant 0 : i32
      %16 = tpu.memref_slice %arg2[%15, %c0_i32_13] : memref<256x32xf32, #tpu.memory_space<any>> -> memref<1x32xf32, #tpu.memory_space<any>>
      %c1_i32_14 = arith.constant 1 : i32
      %c0_i32_15 = arith.constant 0 : i32
      %17 = tpu.memref_slice %arg6[%c1_i32_14, %c0_i32_15] : memref<8x32xf32, #tpu.memory_space<vmem>> -> memref<1x32xf32, #tpu.memory_space<vmem>>
      %18 = tpu.memref_slice %arg7[%c1_i32] : memref<8x!tpu.dma_semaphore, #tpu.memory_space<semaphore_mem>> -> memref<1x!tpu.dma_semaphore, #tpu.memory_space<semaphore_mem>>
      %19 = tpu.memref_squeeze %18 : memref<1x!tpu.dma_semaphore, #tpu.memory_space<semaphore_mem>> -> memref<!tpu.dma_semaphore, #tpu.memory_space<semaphore_mem>>
      tpu.enqueue_dma source(%16 : memref<1x32xf32, #tpu.memory_space<any>>) target(%17 : memref<1x32xf32, #tpu.memory_space<vmem>>) target_semaphore(%19 : memref<!tpu.dma_semaphore, #tpu.memory_space<semaphore_mem>>)
      %c2 = arith.constant 2 : index
      %20 = memref.load %arg1[%c2] : memref<8xi32, #tpu.memory_space<smem>>
      %c2_i32 = arith.constant 2 : i32
      %c0_i32_16 = arith.constant 0 : i32
      %21 = tpu.memref_slice %arg2[%20, %c0_i32_16] : memref<256x32xf32, #tpu.memory_space<any>> -> memref<1x32xf32, #tpu.memory_space<any>>
      %c2_i32_17 = arith.constant 2 : i32
      %c0_i32_18 = arith.constant 0 : i32
      %22 = tpu.memref_slice %arg6[%c2_i32_17, %c0_i32_18] : memref<8x32xf32, #tpu.memory_space<vmem>> -> memref<1x32xf32, #tpu.memory_space<vmem>>
      %23 = tpu.memref_slice %arg7[%c2_i32] : memref<8x!tpu.dma_semaphore, #tpu.memory_space<semaphore_mem>> -> memref<1x!tpu.dma_semaphore, #tpu.memory_space<semaphore_mem>>
      %24 = tpu.memref_squeeze %23 : memref<1x!tpu.dma_semaphore, #tpu.memory_space<semaphore_mem>> -> memref<!tpu.dma_semaphore, #tpu.memory_space<semaphore_mem>>
      tpu.enqueue_dma source(%21 : memref<1x32xf32, #tpu.memory_space<any>>) target(%22 : memref<1x32xf32, #tpu.memory_space<vmem>>) target_semaphore(%24 : memref<!tpu.dma_semaphore, #tpu.memory_space<semaphore_mem>>)
      %c3 = arith.constant 3 : index
      %25 = memref.load %arg1[%c3] : memref<8xi32, #tpu.memory_space<smem>>
      %c3_i32 = arith.constant 3 : i32
      %c0_i32_19 = arith.constant 0 : i32
      %26 = tpu.memref_slice %arg2[%25, %c0_i32_19] : memref<256x32xf32, #tpu.memory_space<any>> -> memref<1x32xf32, #tpu.memory_space<any>>
      %c3_i32_20 = arith.constant 3 : i32
      %c0_i32_21 = arith.constant 0 : i32
      %27 = tpu.memref_slice %arg6[%c3_i32_20, %c0_i32_21] : memref<8x32xf32, #tpu.memory_space<vmem>> -> memref<1x32xf32, #tpu.memory_space<vmem>>
      %28 = tpu.memref_slice %arg7[%c3_i32] : memref<8x!tpu.dma_semaphore, #tpu.memory_space<semaphore_mem>> -> memref<1x!tpu.dma_semaphore, #tpu.memory_space<semaphore_mem>>
      %29 = tpu.memref_squeeze %28 : memref<1x!tpu.dma_semaphore, #tpu.memory_space<semaphore_mem>> -> memref<!tpu.dma_semaphore, #tpu.memory_space<semaphore_mem>>
      tpu.enqueue_dma source(%26 : memref<1x32xf32, #tpu.memory_space<any>>) target(%27 : memref<1x32xf32, #tpu.memory_space<vmem>>) target_semaphore(%29 : memref<!tpu.dma_semaphore, #tpu.memory_space<semaphore_mem>>)
      %c4 = arith.constant 4 : index
      %30 = memref.load %arg1[%c4] : memref<8xi32, #tpu.memory_space<smem>>
      %c4_i32 = arith.constant 4 : i32
      %c0_i32_22 = arith.constant 0 : i32
      %31 = tpu.memref_slice %arg2[%30, %c0_i32_22] : memref<256x32xf32, #tpu.memory_space<any>> -> memref<1x32xf32, #tpu.memory_space<any>>
      %c4_i32_23 = arith.constant 4 : i32
      %c0_i32_24 = arith.constant 0 : i32
      %32 = tpu.memref_slice %arg6[%c4_i32_23, %c0_i32_24] : memref<8x32xf32, #tpu.memory_space<vmem>> -> memref<1x32xf32, #tpu.memory_space<vmem>>
      %33 = tpu.memref_slice %arg7[%c4_i32] : memref<8x!tpu.dma_semaphore, #tpu.memory_space<semaphore_mem>> -> memref<1x!tpu.dma_semaphore, #tpu.memory_space<semaphore_mem>>
      %34 = tpu.memref_squeeze %33 : memref<1x!tpu.dma_semaphore, #tpu.memory_space<semaphore_mem>> -> memref<!tpu.dma_semaphore, #tpu.memory_space<semaphore_mem>>
      tpu.enqueue_dma source(%31 : memref<1x32xf32, #tpu.memory_space<any>>) target(%32 : memref<1x32xf32, #tpu.memory_space<vmem>>) target_semaphore(%34 : memref<!tpu.dma_semaphore, #tpu.memory_space<semaphore_mem>>)
      %c5 = arith.constant 5 : index
      %35 = memref.load %arg1[%c5] : memref<8xi32, #tpu.memory_space<smem>>
      %c5_i32 = arith.constant 5 : i32
      %c0_i32_25 = arith.constant 0 : i32
      %36 = tpu.memref_slice %arg2[%35, %c0_i32_25] : memref<256x32xf32, #tpu.memory_space<any>> -> memref<1x32xf32, #tpu.memory_space<any>>
      %c5_i32_26 = arith.constant 5 : i32
      %c0_i32_27 = arith.constant 0 : i32
      %37 = tpu.memref_slice %arg6[%c5_i32_26, %c0_i32_27] : memref<8x32xf32, #tpu.memory_space<vmem>> -> memref<1x32xf32, #tpu.memory_space<vmem>>
      %38 = tpu.memref_slice %arg7[%c5_i32] : memref<8x!tpu.dma_semaphore, #tpu.memory_space<semaphore_mem>> -> memref<1x!tpu.dma_semaphore, #tpu.memory_space<semaphore_mem>>
      %39 = tpu.memref_squeeze %38 : memref<1x!tpu.dma_semaphore, #tpu.memory_space<semaphore_mem>> -> memref<!tpu.dma_semaphore, #tpu.memory_space<semaphore_mem>>
      tpu.enqueue_dma source(%36 : memref<1x32xf32, #tpu.memory_space<any>>) target(%37 : memref<1x32xf32, #tpu.memory_space<vmem>>) target_semaphore(%39 : memref<!tpu.dma_semaphore, #tpu.memory_space<semaphore_mem>>)
      %c6 = arith.constant 6 : index
      %40 = memref.load %arg1[%c6] : memref<8xi32, #tpu.memory_space<smem>>
      %c6_i32 = arith.constant 6 : i32
      %c0_i32_28 = arith.constant 0 : i32
      %41 = tpu.memref_slice %arg2[%40, %c0_i32_28] : memref<256x32xf32, #tpu.memory_space<any>> -> memref<1x32xf32, #tpu.memory_space<any>>
      %c6_i32_29 = arith.constant 6 : i32
      %c0_i32_30 = arith.constant 0 : i32
      %42 = tpu.memref_slice %arg6[%c6_i32_29, %c0_i32_30] : memref<8x32xf32, #tpu.memory_space<vmem>> -> memref<1x32xf32, #tpu.memory_space<vmem>>
      %43 = tpu.memref_slice %arg7[%c6_i32] : memref<8x!tpu.dma_semaphore, #tpu.memory_space<semaphore_mem>> -> memref<1x!tpu.dma_semaphore, #tpu.memory_space<semaphore_mem>>
      %44 = tpu.memref_squeeze %43 : memref<1x!tpu.dma_semaphore, #tpu.memory_space<semaphore_mem>> -> memref<!tpu.dma_semaphore, #tpu.memory_space<semaphore_mem>>
      tpu.enqueue_dma source(%41 : memref<1x32xf32, #tpu.memory_space<any>>) target(%42 : memref<1x32xf32, #tpu.memory_space<vmem>>) target_semaphore(%44 : memref<!tpu.dma_semaphore, #tpu.memory_space<semaphore_mem>>)
      %c7 = arith.constant 7 : index
      %45 = memref.load %arg1[%c7] : memref<8xi32, #tpu.memory_space<smem>>
      %c7_i32 = arith.constant 7 : i32
      %c0_i32_31 = arith.constant 0 : i32
      %46 = tpu.memref_slice %arg2[%45, %c0_i32_31] : memref<256x32xf32, #tpu.memory_space<any>> -> memref<1x32xf32, #tpu.memory_space<any>>
      %c7_i32_32 = arith.constant 7 : i32
      %c0_i32_33 = arith.constant 0 : i32
      %47 = tpu.memref_slice %arg6[%c7_i32_32, %c0_i32_33] : memref<8x32xf32, #tpu.memory_space<vmem>> -> memref<1x32xf32, #tpu.memory_space<vmem>>
      %48 = tpu.memref_slice %arg7[%c7_i32] : memref<8x!tpu.dma_semaphore, #tpu.memory_space<semaphore_mem>> -> memref<1x!tpu.dma_semaphore, #tpu.memory_space<semaphore_mem>>
      %49 = tpu.memref_squeeze %48 : memref<1x!tpu.dma_semaphore, #tpu.memory_space<semaphore_mem>> -> memref<!tpu.dma_semaphore, #tpu.memory_space<semaphore_mem>>
      tpu.enqueue_dma source(%46 : memref<1x32xf32, #tpu.memory_space<any>>) target(%47 : memref<1x32xf32, #tpu.memory_space<vmem>>) target_semaphore(%49 : memref<!tpu.dma_semaphore, #tpu.memory_space<semaphore_mem>>)
      %c0_i32_34 = arith.constant 0 : i32
      %c0_i32_35 = arith.constant 0 : i32
      %50 = tpu.memref_slice %arg2[%10, %c0_i32_35] : memref<256x32xf32, #tpu.memory_space<any>> -> memref<1x32xf32, #tpu.memory_space<any>>
      %c0_i32_36 = arith.constant 0 : i32
      %c0_i32_37 = arith.constant 0 : i32
      %51 = tpu.memref_slice %arg6[%c0_i32_36, %c0_i32_37] : memref<8x32xf32, #tpu.memory_space<vmem>> -> memref<1x32xf32, #tpu.memory_space<vmem>>
      %52 = tpu.memref_slice %arg7[%c0_i32_34] : memref<8x!tpu.dma_semaphore, #tpu.memory_space<semaphore_mem>> -> memref<1x!tpu.dma_semaphore, #tpu.memory_space<semaphore_mem>>
      %53 = tpu.memref_squeeze %52 : memref<1x!tpu.dma_semaphore, #tpu.memory_space<semaphore_mem>> -> memref<!tpu.dma_semaphore, #tpu.memory_space<semaphore_mem>>
      tpu.wait_dma2 semaphore(%53 : memref<!tpu.dma_semaphore, #tpu.memory_space<semaphore_mem>>) src(%50 : memref<1x32xf32, #tpu.memory_space<any>>) dst(%51 : memref<1x32xf32, #tpu.memory_space<vmem>>)
      %c1_i32_38 = arith.constant 1 : i32
      %c0_i32_39 = arith.constant 0 : i32
      %54 = tpu.memref_slice %arg2[%15, %c0_i32_39] : memref<256x32xf32, #tpu.memory_space<any>> -> memref<1x32xf32, #tpu.memory_space<any>>
      %c1_i32_40 = arith.constant 1 : i32
      %c0_i32_41 = arith.constant 0 : i32
      %55 = tpu.memref_slice %arg6[%c1_i32_40, %c0_i32_41] : memref<8x32xf32, #tpu.memory_space<vmem>> -> memref<1x32xf32, #tpu.memory_space<vmem>>
      %56 = tpu.memref_slice %arg7[%c1_i32_38] : memref<8x!tpu.dma_semaphore, #tpu.memory_space<semaphore_mem>> -> memref<1x!tpu.dma_semaphore, #tpu.memory_space<semaphore_mem>>
      %57 = tpu.memref_squeeze %56 : memref<1x!tpu.dma_semaphore, #tpu.memory_space<semaphore_mem>> -> memref<!tpu.dma_semaphore, #tpu.memory_space<semaphore_mem>>
      tpu.wait_dma2 semaphore(%57 : memref<!tpu.dma_semaphore, #tpu.memory_space<semaphore_mem>>) src(%54 : memref<1x32xf32, #tpu.memory_space<any>>) dst(%55 : memref<1x32xf32, #tpu.memory_space<vmem>>)
      %c2_i32_42 = arith.constant 2 : i32
      %c0_i32_43 = arith.constant 0 : i32
      %58 = tpu.memref_slice %arg2[%20, %c0_i32_43] : memref<256x32xf32, #tpu.memory_space<any>> -> memref<1x32xf32, #tpu.memory_space<any>>
      %c2_i32_44 = arith.constant 2 : i32
      %c0_i32_45 = arith.constant 0 : i32
      %59 = tpu.memref_slice %arg6[%c2_i32_44, %c0_i32_45] : memref<8x32xf32, #tpu.memory_space<vmem>> -> memref<1x32xf32, #tpu.memory_space<vmem>>
      %60 = tpu.memref_slice %arg7[%c2_i32_42] : memref<8x!tpu.dma_semaphore, #tpu.memory_space<semaphore_mem>> -> memref<1x!tpu.dma_semaphore, #tpu.memory_space<semaphore_mem>>
      %61 = tpu.memref_squeeze %60 : memref<1x!tpu.dma_semaphore, #tpu.memory_space<semaphore_mem>> -> memref<!tpu.dma_semaphore, #tpu.memory_space<semaphore_mem>>
      tpu.wait_dma2 semaphore(%61 : memref<!tpu.dma_semaphore, #tpu.memory_space<semaphore_mem>>) src(%58 : memref<1x32xf32, #tpu.memory_space<any>>) dst(%59 : memref<1x32xf32, #tpu.memory_space<vmem>>)
      %c3_i32_46 = arith.constant 3 : i32
      %c0_i32_47 = arith.constant 0 : i32
      %62 = tpu.memref_slice %arg2[%25, %c0_i32_47] : memref<256x32xf32, #tpu.memory_space<any>> -> memref<1x32xf32, #tpu.memory_space<any>>
      %c3_i32_48 = arith.constant 3 : i32
      %c0_i32_49 = arith.constant 0 : i32
      %63 = tpu.memref_slice %arg6[%c3_i32_48, %c0_i32_49] : memref<8x32xf32, #tpu.memory_space<vmem>> -> memref<1x32xf32, #tpu.memory_space<vmem>>
      %64 = tpu.memref_slice %arg7[%c3_i32_46] : memref<8x!tpu.dma_semaphore, #tpu.memory_space<semaphore_mem>> -> memref<1x!tpu.dma_semaphore, #tpu.memory_space<semaphore_mem>>
      %65 = tpu.memref_squeeze %64 : memref<1x!tpu.dma_semaphore, #tpu.memory_space<semaphore_mem>> -> memref<!tpu.dma_semaphore, #tpu.memory_space<semaphore_mem>>
      tpu.wait_dma2 semaphore(%65 : memref<!tpu.dma_semaphore, #tpu.memory_space<semaphore_mem>>) src(%62 : memref<1x32xf32, #tpu.memory_space<any>>) dst(%63 : memref<1x32xf32, #tpu.memory_space<vmem>>)
      %c4_i32_50 = arith.constant 4 : i32
      %c0_i32_51 = arith.constant 0 : i32
      %66 = tpu.memref_slice %arg2[%30, %c0_i32_51] : memref<256x32xf32, #tpu.memory_space<any>> -> memref<1x32xf32, #tpu.memory_space<any>>
      %c4_i32_52 = arith.constant 4 : i32
      %c0_i32_53 = arith.constant 0 : i32
      %67 = tpu.memref_slice %arg6[%c4_i32_52, %c0_i32_53] : memref<8x32xf32, #tpu.memory_space<vmem>> -> memref<1x32xf32, #tpu.memory_space<vmem>>
      %68 = tpu.memref_slice %arg7[%c4_i32_50] : memref<8x!tpu.dma_semaphore, #tpu.memory_space<semaphore_mem>> -> memref<1x!tpu.dma_semaphore, #tpu.memory_space<semaphore_mem>>
      %69 = tpu.memref_squeeze %68 : memref<1x!tpu.dma_semaphore, #tpu.memory_space<semaphore_mem>> -> memref<!tpu.dma_semaphore, #tpu.memory_space<semaphore_mem>>
      tpu.wait_dma2 semaphore(%69 : memref<!tpu.dma_semaphore, #tpu.memory_space<semaphore_mem>>) src(%66 : memref<1x32xf32, #tpu.memory_space<any>>) dst(%67 : memref<1x32xf32, #tpu.memory_space<vmem>>)
      %c5_i32_54 = arith.constant 5 : i32
      %c0_i32_55 = arith.constant 0 : i32
      %70 = tpu.memref_slice %arg2[%35, %c0_i32_55] : memref<256x32xf32, #tpu.memory_space<any>> -> memref<1x32xf32, #tpu.memory_space<any>>
      %c5_i32_56 = arith.constant 5 : i32
      %c0_i32_57 = arith.constant 0 : i32
      %71 = tpu.memref_slice %arg6[%c5_i32_56, %c0_i32_57] : memref<8x32xf32, #tpu.memory_space<vmem>> -> memref<1x32xf32, #tpu.memory_space<vmem>>
      %72 = tpu.memref_slice %arg7[%c5_i32_54] : memref<8x!tpu.dma_semaphore, #tpu.memory_space<semaphore_mem>> -> memref<1x!tpu.dma_semaphore, #tpu.memory_space<semaphore_mem>>
      %73 = tpu.memref_squeeze %72 : memref<1x!tpu.dma_semaphore, #tpu.memory_space<semaphore_mem>> -> memref<!tpu.dma_semaphore, #tpu.memory_space<semaphore_mem>>
      tpu.wait_dma2 semaphore(%73 : memref<!tpu.dma_semaphore, #tpu.memory_space<semaphore_mem>>) src(%70 : memref<1x32xf32, #tpu.memory_space<any>>) dst(%71 : memref<1x32xf32, #tpu.memory_space<vmem>>)
      %c6_i32_58 = arith.constant 6 : i32
      %c0_i32_59 = arith.constant 0 : i32
      %74 = tpu.memref_slice %arg2[%40, %c0_i32_59] : memref<256x32xf32, #tpu.memory_space<any>> -> memref<1x32xf32, #tpu.memory_space<any>>
      %c6_i32_60 = arith.constant 6 : i32
      %c0_i32_61 = arith.constant 0 : i32
      %75 = tpu.memref_slice %arg6[%c6_i32_60, %c0_i32_61] : memref<8x32xf32, #tpu.memory_space<vmem>> -> memref<1x32xf32, #tpu.memory_space<vmem>>
      %76 = tpu.memref_slice %arg7[%c6_i32_58] : memref<8x!tpu.dma_semaphore, #tpu.memory_space<semaphore_mem>> -> memref<1x!tpu.dma_semaphore, #tpu.memory_space<semaphore_mem>>
      %77 = tpu.memref_squeeze %76 : memref<1x!tpu.dma_semaphore, #tpu.memory_space<semaphore_mem>> -> memref<!tpu.dma_semaphore, #tpu.memory_space<semaphore_mem>>
      tpu.wait_dma2 semaphore(%77 : memref<!tpu.dma_semaphore, #tpu.memory_space<semaphore_mem>>) src(%74 : memref<1x32xf32, #tpu.memory_space<any>>) dst(%75 : memref<1x32xf32, #tpu.memory_space<vmem>>)
      %c7_i32_62 = arith.constant 7 : i32
      %c0_i32_63 = arith.constant 0 : i32
      %78 = tpu.memref_slice %arg2[%45, %c0_i32_63] : memref<256x32xf32, #tpu.memory_space<any>> -> memref<1x32xf32, #tpu.memory_space<any>>
      %c7_i32_64 = arith.constant 7 : i32
      %c0_i32_65 = arith.constant 0 : i32
      %79 = tpu.memref_slice %arg6[%c7_i32_64, %c0_i32_65] : memref<8x32xf32, #tpu.memory_space<vmem>> -> memref<1x32xf32, #tpu.memory_space<vmem>>
      %80 = tpu.memref_slice %arg7[%c7_i32_62] : memref<8x!tpu.dma_semaphore, #tpu.memory_space<semaphore_mem>> -> memref<1x!tpu.dma_semaphore, #tpu.memory_space<semaphore_mem>>
      %81 = tpu.memref_squeeze %80 : memref<1x!tpu.dma_semaphore, #tpu.memory_space<semaphore_mem>> -> memref<!tpu.dma_semaphore, #tpu.memory_space<semaphore_mem>>
      tpu.wait_dma2 semaphore(%81 : memref<!tpu.dma_semaphore, #tpu.memory_space<semaphore_mem>>) src(%78 : memref<1x32xf32, #tpu.memory_space<any>>) dst(%79 : memref<1x32xf32, #tpu.memory_space<vmem>>)
    } else {
    }
    %c0 = arith.constant 0 : index
    %c0_1 = arith.constant 0 : index
    %3 = vector.load %arg6[%c0, %c0_1] : memref<8x32xf32, #tpu.memory_space<vmem>>, vector<8x32xf32>
    %c0_2 = arith.constant 0 : index
    %c0_3 = arith.constant 0 : index
    %4 = vector.load %arg3[%c0_2, %c0_3] : memref<32x128xf32, #tpu.memory_space<vmem>>, vector<32x128xf32>
    %cst = arith.constant dense<0.000000e+00> : vector<8x128xf32>
    %5 = tpu.matmul %3, %4, %cst {dimension_numbers = #tpu.dot_dimension_numbers<[1], [0], [0], [1], [0, 0, 1, 1], [], []>} : vector<8x32xf32>, vector<32x128xf32>, vector<8x128xf32> -> vector<8x128xf32>
    %c0_4 = arith.constant 0 : index
    %c0_5 = arith.constant 0 : index
    %6 = vector.load %arg4[%c0_4, %c0_5] : memref<1x128xf32, #tpu.memory_space<vmem>>, vector<1x128xf32>
    %7 = vector.broadcast %6 : vector<1x128xf32> to vector<8x128xf32>
    %8 = arith.addf %5, %7 : vector<8x128xf32>
    %c0_6 = arith.constant 0 : index
    %c0_7 = arith.constant 0 : index
    %9 = vector.load %arg5[%c0_6, %c0_7] : memref<8x128xf32, #tpu.memory_space<vmem>>, vector<8x128xf32>
    tpu.vector_store %arg5[%c0_6, %c0_7], %8 {strides = array<i32>} : memref<8x128xf32, #tpu.memory_space<vmem>>, vector<8x128xf32>,
    return
  }
  func.func @transform_1(%arg0: i32, %arg1: memref<8xi32, #tpu.memory_space<smem>>) -> (i32, i32) {
    %c0_i32 = arith.constant 0 : i32
    %c0_i32_0 = arith.constant 0 : i32
    return %c0_i32, %arg0 : i32, i32
  }
  func.func @transform_2(%arg0: i32, %arg1: memref<8xi32, #tpu.memory_space<smem>>) -> (i32, i32) {
    %c0_i32 = arith.constant 0 : i32
    %c0_i32_0 = arith.constant 0 : i32
    return %c0_i32, %arg0 : i32, i32
  }
  func.func @transform_3(%arg0: i32, %arg1: memref<8xi32, #tpu.memory_space<smem>>) -> (i32, i32) {
    %c0_i32 = arith.constant 0 : i32
    %c0_i32_0 = arith.constant 0 : i32
    return %c0_i32, %arg0 : i32, i32
  }
}

</mosaic_0001>

<llo_original>
// kernel: tpu_custom_call.1
$region0: #{tpu_custom_call.1}
  #allocation0 [shape = 'u32[]', space=smem, size = 0x4, offset = 0x4, fixed_abs, tag = 'smem constant byte address 0x4 - core index']
  #allocation1 [shape = 'u32[144,128]{1,0:T(1,128)}', space=vmem, size = 0x12000, scoped, tag = 'internal scratch']
  #allocation2 [shape = 'f32[8,32]{1,0:T(8,128)}', space=vmem, size = 0x1000, scoped, tag = 'scratch operand']
  #allocation3 [shape = 's32[8]{0}', space=sflag, size = 0x20, scoped, tag = 'scratch operand']
  #allocation4 [shape = 's32[1]{0}', space=sflag, size = 0x4, scoped, tag = 'scoped memory for tpu_custom_call.1']
  #allocation5 [shape = 'u8[512]{0}', space=smem, size = 0x200, scoped, tag = 'prefetched SMEM operand 0']
  #allocation9 [shape = 's32[]', space=sflag, size = 0x4, offset = 0, fixed_abs, tag = 'sflag constant byte address 0x0 - dummy sync flag']
  #allocation10 [shape = 's32[]', space=sflag, size = 0x4, offset = 0, fixed_abs, tag = 'sflag constant byte address 0x0 - dummy sync flag']
  #allocation11 [shape = 's32[]', space=sflag, size = 0x4, offset = 0, fixed_abs, tag = 'sflag constant byte address 0x0 - dummy sync flag']
  #allocation12 [shape = 's32[]', space=sflag, size = 0x4, offset = 0, fixed_abs, tag = 'sflag constant byte address 0x0 - dummy sync flag']
  #allocation13 [shape = 's32[]', space=sflag, size = 0x4, offset = 0, fixed_abs, tag = 'sflag constant byte address 0x0 - dummy sync flag']
  #allocation14 [shape = 's32[]', space=sflag, size = 0x4, offset = 0, fixed_abs, tag = 'sflag constant byte address 0x0 - dummy sync flag']
  #allocation15 [shape = 's32[]', space=sflag, size = 0x4, offset = 0, fixed_abs, tag = 'sflag constant byte address 0x0 - dummy sync flag']
  #allocation16 [shape = 's32[]', space=sflag, size = 0x4, offset = 0, fixed_abs, tag = 'sflag constant byte address 0x0 - dummy sync flag']
  %s0 = inlined_call_operand.vmem [shape: s32[8], index: 0, kind: input, shape index: {}]
  %s1 = inlined_call_operand.vmem [shape: f32[256,32], index: 1, kind: input, shape index: {}]
  %s2 = inlined_call_operand.vmem [shape: f32[32,256], index: 2, kind: input, shape index: {}]
  %s3 = inlined_call_operand.vmem [shape: f32[1,256], index: 3, kind: input, shape index: {}]
  %s4 = inlined_call_operand.hbm [shape: f32[8,256], index: 4, kind: output, shape index: {}]
  %s5 = sld [smem:[#allocation0]]
  $region323: #{tpu_custom_call.1} parent=0
    _
  %s7 = ssub.s32 1, %s5
  %s8 = scalar_select 0, %s7, %s5
  %s9 = sshll.u32 %s0, 4
  %s10 = int_to_ptr.vmem [resolvable:$true] %s9
  %12 = dma.vmem_to_smem %s10, 16, [#allocation5], [#allocation4]
  %13 = dma.done [#allocation4], 16
  %14 = sfence
  $region1: #{tpu_custom_call.1} parent=0
    #allocation6 [shape = 'u8[32768]{0}', space=vmem, size = 0x8000, scoped, tag = 'input window, operand 2']
    #allocation7 [shape = 'u8[8192]{0}', space=vmem, size = 0x2000, scoped, tag = 'output window, operand 0']
    #allocation8 [shape = 's32[2]{0}', space=sflag, size = 0x8, scoped, tag = 'scoped memory for tpu_custom_call.1']
    %15 = vsyncpa [#allocation8], 0
    %s16 = scalar_lea.sflag [#allocation8], 1
    %17 = vsyncpa %s16, 0
    loop: start=0, step=1, limit=4
    $region2: #{tpu_custom_call.1} parent=1 // loop_pre_header
      _
    $region3: #{tpu_custom_call.1} parent=1 // loop_header
      %s19 = sphi 0, %s23
      %p20 = scmp.ge.s32.totalorder %s19, 4
      %s29 = sphi 0, %s31
      %s32 = sphi 0, %s29
      %s33 = sphi 0, %s32
      %s49 = sphi 0, %s33
      %s55 = sphi 0, %s57
      %s58 = sphi 0, %s55
      %s59 = sphi 0, %s58
      %s75 = sphi 0, %s59
      %s81 = sphi 0, %s83
      %s84 = sphi 0, %s81
      %s85 = sphi 0, %s84
      %s101 = sphi 0, %s85
    $region4: #{tpu_custom_call.1} parent=1 // loop_header_branch
      %22 = sbr.rel (%p20) target = $region8
    $region5: #{tpu_custom_call.1} parent=1 // loop_body
      %s24 = ssub.s32 %s19, 1
      %s25 = ssub.s32 %s19, 2
      %s26 = sadd.s32 %s19, 1
      %s27 = ssub.s32 %s19, %s26
      %p28 = scmp.eq.s32.totalorder %s27, 0
      %s30 = sadd.s32 %s29, 1
      %s31 = scalar_select %p28, %s29, %s30
      %p34 = pneg %p28
      %p35 = scmp.eq.s32.totalorder %s19, 1
      %p36 = por %p34, %p35
      %p37 = scmp.ne.s32.totalorder %s29, %s32
      %p38 = scmp.eq.s32.totalorder %s19, 0
      %p39 = por %p37, %p38
      %p40 = scmp.ne.s32.totalorder %s29, %s32
      %p41 = scmp.eq.s32.totalorder %s24, 1
      %p42 = por %p40, %p41
      %p43 = scmp.ne.s32.totalorder %s32, %s33
      %p44 = scmp.eq.s32.totalorder %s24, 0
      %p45 = por %p43, %p44
      %p46 = scmp.ne.s32.totalorder %s32, %s33
      %p47 = scmp.eq.s32.totalorder %s25, 1
      %p48 = por %p46, %p47
      %p50 = scmp.ne.s32.totalorder %s33, %s49
      %p51 = scmp.eq.s32.totalorder %s25, 0
      %p52 = por %p50, %p51
      %s53 = ssub.s32 %s19, %s26
      %p54 = scmp.eq.s32.totalorder %s53, 0
      %s56 = sadd.s32 %s55, 1
      %s57 = scalar_select %p54, %s55, %s56
      %p60 = pneg %p54
      %p61 = scmp.eq.s32.totalorder %s19, 1
      %p62 = por %p60, %p61
      %p63 = scmp.ne.s32.totalorder %s55, %s58
      %p64 = scmp.eq.s32.totalorder %s19, 0
      %p65 = por %p63, %p64
      %p66 = scmp.ne.s32.totalorder %s55, %s58
      %p67 = scmp.eq.s32.totalorder %s24, 1
      %p68 = por %p66, %p67
      %p69 = scmp.ne.s32.totalorder %s58, %s59
      %p70 = scmp.eq.s32.totalorder %s24, 0
      %p71 = por %p69, %p70
      %p72 = scmp.ne.s32.totalorder %s58, %s59
      %p73 = scmp.eq.s32.totalorder %s25, 1
      %p74 = por %p72, %p73
      %p76 = scmp.ne.s32.totalorder %s59, %s75
      %p77 = scmp.eq.s32.totalorder %s25, 0
      %p78 = por %p76, %p77
      %s79 = ssub.s32 %s19, %s26
      %p80 = scmp.eq.s32.totalorder %s79, 0
      %s82 = sadd.s32 %s81, 1
      %s83 = scalar_select %p80, %s81, %s82
      %p86 = pneg %p80
      %p87 = scmp.eq.s32.totalorder %s19, 1
      %p88 = por %p86, %p87
      %p89 = scmp.ne.s32.totalorder %s81, %s84
      %p90 = scmp.eq.s32.totalorder %s19, 0
      %p91 = por %p89, %p90
      %p92 = scmp.ne.s32.totalorder %s81, %s84
      %p93 = scmp.eq.s32.totalorder %s24, 1
      %p94 = por %p92, %p93
      %p95 = scmp.ne.s32.totalorder %s84, %s85
      %p96 = scmp.eq.s32.totalorder %s24, 0
      %p97 = por %p95, %p96
      %p98 = scmp.ne.s32.totalorder %s84, %s85
      %p99 = scmp.eq.s32.totalorder %s25, 1
      %p100 = por %p98, %p99
      %p102 = scmp.ne.s32.totalorder %s85, %s101
      %p103 = scmp.eq.s32.totalorder %s25, 0
      %p104 = por %p102, %p103
      %p105 = scmp.le.s32.totalorder 1, %s19
      %p106 = scmp.lt.s32.totalorder %s19, 3
      %p107 = pnand %p105, %p106
      %p108 = pneg %p107
      // Predicated region
      $region9: #{tpu_custom_call.1} parent=5 // pred_check
        _
      $region10: #{tpu_custom_call.1} parent=5 // pred_check_branch
        %110 = sbr.rel (%p107) target = $region12
      $region11: #{tpu_custom_call.1} parent=5 // pred_region
        %s111 = ssub.s32 %s19, 1
      $region12: #{tpu_custom_call.1} parent=5 // pred_fallthru
        _
      %p112 = scmp.lt.s32.totalorder %s19, 2
      // Predicated region
      $region13: #{tpu_custom_call.1} parent=5 // pred_check
        %p113 = pneg %p112
      $region14: #{tpu_custom_call.1} parent=5 // pred_check_branch
        %115 = sbr.rel (%p113) target = $region16
      $region15: #{tpu_custom_call.1} parent=5 // pred_region
        // Predicated region
        $region17: #{tpu_custom_call.1} parent=15 // pred_check
          %p116 = pneg %p39
        $region18: #{tpu_custom_call.1} parent=15 // pred_check_branch
          %118 = sbr.rel (%p116) target = $region20
        $region19: #{tpu_custom_call.1} parent=15 // pred_region
          %s119 = sand.u32 %s29, 1
          %s120 = sand.u32 %s29, 1
          %s121 = smul.addr %s120, 32
          %s122 = scalar_lea.vmem [#allocation6], %s121
          %s123 = smul.addr %s19, 8
          %s124 = scalar_lea.vmem %s2, %s123
          // Predicated region
          $region21: #{tpu_custom_call.1} parent=19 // pred_check
            _
          $region22: #{tpu_custom_call.1} parent=19 // pred_check_branch
            %126 = sbr.rel (0) target = $region24
          $region23: #{tpu_custom_call.1} parent=19 // pred_region
            // Predicated region
            $region25: #{tpu_custom_call.1} parent=23 // pred_check
              _
            $region26: #{tpu_custom_call.1} parent=23 // pred_check_branch
              %128 = sbr.rel (0) target = $region28
            $region27: #{tpu_custom_call.1} parent=23 // pred_region
              // Predicated region
              $region40: #{tpu_custom_call.1} parent=27 // pred_check
                _
              $region41: #{tpu_custom_call.1} parent=27 // pred_check_branch
                %149 = sbr.rel (0) target = $region43
              $region42: #{tpu_custom_call.1} parent=27 // pred_region
                loop: start=0, step=1, limit=1
                $region44: #{tpu_custom_call.1} parent=42 // loop_pre_header
                  _
                $region45: #{tpu_custom_call.1} parent=42 // loop_header
                  %s151 = sphi 0, %s155
                  %p152 = scmp.ge.s32.totalorder %s151, 1
                  %s156 = sphi %s124, %s124
                  %s157 = sphi %s122, %s122
                $region46: #{tpu_custom_call.1} parent=42 // loop_header_branch
                  %154 = sbr.rel (%p152) target = $region50
                $region47: #{tpu_custom_call.1} parent=42 // loop_body
                  %v158 = vld [vmem:[%s156] sm:$0xff]
                  %159 = vst [vmem:[%s157] sm:$0xff] %v158
                  %v160 = vld [vmem:[%s156 + $0x10] sm:$0xff]
                  %161 = vst [vmem:[%s157 + $0x8] sm:$0xff] %v160
                  %v162 = vld [vmem:[%s156 + $0x20] sm:$0xff]
                  %163 = vst [vmem:[%s157 + $0x10] sm:$0xff] %v162
                  %v164 = vld [vmem:[%s156 + $0x30] sm:$0xff]
                  %165 = vst [vmem:[%s157 + $0x18] sm:$0xff] %v164
                $region48: #{tpu_custom_call.1} parent=42 // loop_footer
                  %s155 = sadd.s32 1, %s151
                $region49: #{tpu_custom_call.1} parent=42 // loop_footer_branch
                  %150 = sbr.rel target = $region45
                $region50: #{tpu_custom_call.1} parent=42 // loop_exit
                  _
              $region43: #{tpu_custom_call.1} parent=27 // pred_fallthru
                _
              // Predicated region
              $region51: #{tpu_custom_call.1} parent=27 // pred_check
                _
              $region52: #{tpu_custom_call.1} parent=27 // pred_check_branch
                %167 = sbr.rel target = $region54
              $region53: #{tpu_custom_call.1} parent=27 // pred_region
                _
              $region54: #{tpu_custom_call.1} parent=27 // pred_fallthru
                _
            $region28: #{tpu_custom_call.1} parent=23 // pred_fallthru
              _
            // Predicated region
            $region29: #{tpu_custom_call.1} parent=23 // pred_check
              _
            $region30: #{tpu_custom_call.1} parent=23 // pred_check_branch
              %130 = sbr.rel target = $region32
            $region31: #{tpu_custom_call.1} parent=23 // pred_region
              loop: start=0, step=1, limit=1
              $region33: #{tpu_custom_call.1} parent=31 // loop_pre_header
                _
              $region34: #{tpu_custom_call.1} parent=31 // loop_header
                %s133 = sphi 0, %s137
                %p134 = scmp.ge.s32.totalorder %s133, 1
                %s138 = sphi %s124, %s124
                %s139 = sphi %s122, %s122
              $region35: #{tpu_custom_call.1} parent=31 // loop_header_branch
                %136 = sbr.rel (%p134) target = $region39
              $region36: #{tpu_custom_call.1} parent=31 // loop_body
                %v140 = vld [vmem:[%s138] sm:$0xff]
                %141 = vst [vmem:[%s139] sm:$0xff] %v140
                %v142 = vld [vmem:[%s138 + $0x10] sm:$0xff]
                %143 = vst [vmem:[%s139 + $0x8] sm:$0xff] %v142
                %v144 = vld [vmem:[%s138 + $0x20] sm:$0xff]
                %145 = vst [vmem:[%s139 + $0x10] sm:$0xff] %v144
                %v146 = vld [vmem:[%s138 + $0x30] sm:$0xff]
                %147 = vst [vmem:[%s139 + $0x18] sm:$0xff] %v146
              $region37: #{tpu_custom_call.1} parent=31 // loop_footer
                %s137 = sadd.s32 1, %s133
              $region38: #{tpu_custom_call.1} parent=31 // loop_footer_branch
                %132 = sbr.rel target = $region34
              $region39: #{tpu_custom_call.1} parent=31 // loop_exit
                _
            $region32: #{tpu_custom_call.1} parent=23 // pred_fallthru
              _
          $region24: #{tpu_custom_call.1} parent=19 // pred_fallthru
            _
          %168 = vnop
        $region20: #{tpu_custom_call.1} parent=15 // pred_fallthru
          _
        // Predicated region
        $region55: #{tpu_custom_call.1} parent=15 // pred_check
          %p169 = pneg %p65
        $region56: #{tpu_custom_call.1} parent=15 // pred_check_branch
          %171 = sbr.rel (%p169) target = $region58
        $region57: #{tpu_custom_call.1} parent=15 // pred_region
          %p172 = scmp.lt.s32.totalorder %s19, 1
          %s173 = scalar_select %p172, %s19, 1
          %s174 = scalar_lea.vmem %s3, %s173
        $region58: #{tpu_custom_call.1} parent=15 // pred_fallthru
          _
      $region16: #{tpu_custom_call.1} parent=5 // pred_fallthru
        _
      %p175 = scmp.le.s32.totalorder 1, %s19
      %p176 = scmp.lt.s32.totalorder %s19, 3
      %p177 = pnand %p175, %p176
      %p178 = pneg %p177
      // Predicated region
      $region59: #{tpu_custom_call.1} parent=5 // pred_check
        _
      $region60: #{tpu_custom_call.1} parent=5 // pred_check_branch
        %180 = sbr.rel (%p177) target = $region62
      $region61: #{tpu_custom_call.1} parent=5 // pred_region
        %s181 = ssub.s32 %s19, 1
        %s182 = sand.u32 %s32, 1
        %s183 = sand.u32 %s32, 1
        %s184 = smul.addr %s183, 32
        %s185 = scalar_lea.vmem [#allocation6], %s184
        // Predicated region
        $region63: #{tpu_custom_call.1} parent=61 // pred_check
          %p186 = pneg %p45
        $region64: #{tpu_custom_call.1} parent=61 // pred_check_branch
          %188 = sbr.rel (%p186) target = $region66
        $region65: #{tpu_custom_call.1} parent=61 // pred_region
          _
        $region66: #{tpu_custom_call.1} parent=61 // pred_fallthru
          _
        %s189 = sand.u32 %s32, 1
        %s190 = sand.u32 %s32, 1
        %s191 = smul.addr %s190, 32
        %s192 = scalar_lea.vmem [#allocation6], %s191
        %p193 = pneg %p45
        %p194 = pneg %p42
        %p195 = scmp.lt.s32.totalorder %s24, 1
        %s196 = scalar_select %p195, %s24, 1
        %s197 = scalar_lea.vmem %s3, %s196
        %p198 = pneg %p71
        %p199 = pneg %p68
        %p200 = pneg %p97
        %p201 = pneg %p94
        %s202 = sand.u32 %s84, 1
        %s203 = scalar_lea.sflag [#allocation8], %s202
        %s204 = sand.u32 %s84, 1
        %s205 = smul.addr %s204, 8
        %s206 = scalar_lea.vmem [#allocation7], %s205
        %p207 = scmp.lt.s32.totalorder %s24, 1
        %s208 = scalar_select %p207, %s24, 1
        %s209 = scalar_lea.vmem %s3, %s208
        %p210 = scmp.eq.s32.totalorder %s24, 0
        // Predicated region
        $region67: #{tpu_custom_call.1} parent=61 // pred_check
          %p211 = pneg %p210
        $region68: #{tpu_custom_call.1} parent=61 // pred_check_branch
          %213 = sbr.rel (%p211) target = $region70
        $region69: #{tpu_custom_call.1} parent=61 // pred_region
          %s214 = sld [smem:[#allocation5]]
          %s215 = scalar_lea.vmem %s1, %s214
          %p217 = scmp.lt.u32.totalorder 1, 8
          %p218 = pneg %p217
          // Predicated region
          $region71: #{tpu_custom_call.1} parent=69 // pred_check
            _
          $region72: #{tpu_custom_call.1} parent=69 // pred_check_branch
            %220 = sbr.rel (%p217) target = $region74
          $region73: #{tpu_custom_call.1} parent=69 // pred_region
            %s235 = sand.u32 1, 7
            %p236 = scmp.eq.s32.totalorder %s235, 0
            %p237 = pneg %p236
            // Predicated region
            $region86: #{tpu_custom_call.1} parent=73 // pred_check
              _
            $region87: #{tpu_custom_call.1} parent=73 // pred_check_branch
              %239 = sbr.rel (%p236) target = $region89
            $region88: #{tpu_custom_call.1} parent=73 // pred_region
              %s240 = sand.u32 1, 7
              %s241 = ssub.s32 1, %s240
              %s242 = scalar_lea.vmem %s215, %s241
              %s243 = ssub.s32 1, %s240
              %s244 = scalar_lea.vmem [#allocation2], %s243
              %s245 = sshllo.u32 0, %s240
              loop: start=0, step=1, limit=1
              $region90: #{tpu_custom_call.1} parent=88 // loop_pre_header
                _
              $region91: #{tpu_custom_call.1} parent=88 // loop_header
                %s247 = sphi 0, %s251
                %p248 = scmp.ge.s32.totalorder %s247, 1
                %s252 = sphi %s242, %s242
                %s253 = sphi %s244, %s244
              $region92: #{tpu_custom_call.1} parent=88 // loop_header_branch
                %250 = sbr.rel (%p248) target = $region96
              $region93: #{tpu_custom_call.1} parent=88 // loop_body
                %v254 = vld [vmem:[%s252] sm:%s245]
                %255 = vst [vmem:[%s253] sm:%s245] %v254
              $region94: #{tpu_custom_call.1} parent=88 // loop_footer
                %s251 = sadd.s32 1, %s247
              $region95: #{tpu_custom_call.1} parent=88 // loop_footer_branch
                %246 = sbr.rel target = $region91
              $region96: #{tpu_custom_call.1} parent=88 // loop_exit
                _
            $region89: #{tpu_custom_call.1} parent=73 // pred_fallthru
              _
          $region74: #{tpu_custom_call.1} parent=69 // pred_fallthru
            _
          // Predicated region
          $region75: #{tpu_custom_call.1} parent=69 // pred_check
            %p221 = pneg %p217
          $region76: #{tpu_custom_call.1} parent=69 // pred_check_branch
            %223 = sbr.rel (%p221) target = $region78
          $region77: #{tpu_custom_call.1} parent=69 // pred_region
            %s224 = sshllo.u32 0, 1
            loop: start=0, step=1, limit=1
            $region79: #{tpu_custom_call.1} parent=77 // loop_pre_header
              _
            $region80: #{tpu_custom_call.1} parent=77 // loop_header
              %s226 = sphi 0, %s230
              %p227 = scmp.ge.s32.totalorder %s226, 1
              %s231 = sphi %s215, %s215
              %s232 = sphi [#allocation2], [#allocation2]
            $region81: #{tpu_custom_call.1} parent=77 // loop_header_branch
              %229 = sbr.rel (%p227) target = $region85
            $region82: #{tpu_custom_call.1} parent=77 // loop_body
              %v233 = vld [vmem:[%s231] sm:%s224]
              %234 = vst [vmem:[%s232] sm:%s224] %v233
            $region83: #{tpu_custom_call.1} parent=77 // loop_footer
              %s230 = sadd.s32 1, %s226
            $region84: #{tpu_custom_call.1} parent=77 // loop_footer_branch
              %225 = sbr.rel target = $region80
            $region85: #{tpu_custom_call.1} parent=77 // loop_exit
              _
          $region78: #{tpu_custom_call.1} parent=69 // pred_fallthru
            _
          // Predicated region
          $region97: #{tpu_custom_call.1} parent=69 // pred_check
            _
          $region98: #{tpu_custom_call.1} parent=69 // pred_check_branch
            %258 = sbr.rel (0) target = $region100
          $region99: #{tpu_custom_call.1} parent=69 // pred_region
            %259 = vsyncadd [#allocation3], 16
          $region100: #{tpu_custom_call.1} parent=69 // pred_fallthru
            _
          %s260 = sld [smem:[#allocation5 + $0x1]]
          %s261 = scalar_lea.vmem %s1, %s260
          %s262 = scalar_lea.vmem [#allocation2], 1
          %s263 = scalar_lea.sflag [#allocation3], 1
          %p265 = scmp.lt.u32.totalorder 1, 8
          %p266 = pneg %p265
          // Predicated region
          $region101: #{tpu_custom_call.1} parent=69 // pred_check
            _
          $region102: #{tpu_custom_call.1} parent=69 // pred_check_branch
            %268 = sbr.rel (%p265) target = $region104
          $region103: #{tpu_custom_call.1} parent=69 // pred_region
            %s283 = sand.u32 1, 7
            %p284 = scmp.eq.s32.totalorder %s283, 0
            %p285 = pneg %p284
            // Predicated region
            $region116: #{tpu_custom_call.1} parent=103 // pred_check
              _
            $region117: #{tpu_custom_call.1} parent=103 // pred_check_branch
              %287 = sbr.rel (%p284) target = $region119
            $region118: #{tpu_custom_call.1} parent=103 // pred_region
              %s288 = sand.u32 1, 7
              %s289 = ssub.s32 1, %s288
              %s290 = scalar_lea.vmem %s261, %s289
              %s291 = ssub.s32 1, %s288
              %s292 = scalar_lea.vmem %s262, %s291 [#allocation2]
              %s293 = sshllo.u32 0, %s288
              loop: start=0, step=1, limit=1
              $region120: #{tpu_custom_call.1} parent=118 // loop_pre_header
                _
              $region121: #{tpu_custom_call.1} parent=118 // loop_header
                %s295 = sphi 0, %s299
                %p296 = scmp.ge.s32.totalorder %s295, 1
                %s300 = sphi %s290, %s290
                %s301 = sphi %s292, %s292
              $region122: #{tpu_custom_call.1} parent=118 // loop_header_branch
                %298 = sbr.rel (%p296) target = $region126
              $region123: #{tpu_custom_call.1} parent=118 // loop_body
                %v302 = vld [vmem:[%s300] sm:%s293]
                %303 = vst [vmem:[%s301] sm:%s293] %v302
              $region124: #{tpu_custom_call.1} parent=118 // loop_footer
                %s299 = sadd.s32 1, %s295
              $region125: #{tpu_custom_call.1} parent=118 // loop_footer_branch
                %294 = sbr.rel target = $region121
              $region126: #{tpu_custom_call.1} parent=118 // loop_exit
                _
            $region119: #{tpu_custom_call.1} parent=103 // pred_fallthru
              _
          $region104: #{tpu_custom_call.1} parent=69 // pred_fallthru
            _
          // Predicated region
          $region105: #{tpu_custom_call.1} parent=69 // pred_check
            %p269 = pneg %p265
          $region106: #{tpu_custom_call.1} parent=69 // pred_check_branch
            %271 = sbr.rel (%p269) target = $region108
          $region107: #{tpu_custom_call.1} parent=69 // pred_region
            %s272 = sshllo.u32 0, 1
            loop: start=0, step=1, limit=1
            $region109: #{tpu_custom_call.1} parent=107 // loop_pre_header
              _
            $region110: #{tpu_custom_call.1} parent=107 // loop_header
              %s274 = sphi 0, %s278
              %p275 = scmp.ge.s32.totalorder %s274, 1
              %s279 = sphi %s261, %s261
              %s280 = sphi %s262, %s262
            $region111: #{tpu_custom_call.1} parent=107 // loop_header_branch
              %277 = sbr.rel (%p275) target = $region115
            $region112: #{tpu_custom_call.1} parent=107 // loop_body
              %v281 = vld [vmem:[%s279] sm:%s272]
              %282 = vst [vmem:[%s280] sm:%s272] %v281
            $region113: #{tpu_custom_call.1} parent=107 // loop_footer
              %s278 = sadd.s32 1, %s274
            $region114: #{tpu_custom_call.1} parent=107 // loop_footer_branch
              %273 = sbr.rel target = $region110
            $region115: #{tpu_custom_call.1} parent=107 // loop_exit
              _
          $region108: #{tpu_custom_call.1} parent=69 // pred_fallthru
            _
          // Predicated region
          $region127: #{tpu_custom_call.1} parent=69 // pred_check
            _
          $region128: #{tpu_custom_call.1} parent=69 // pred_check_branch
            %306 = sbr.rel (0) target = $region130
          $region129: #{tpu_custom_call.1} parent=69 // pred_region
            %307 = vsyncadd %s263, 16
          $region130: #{tpu_custom_call.1} parent=69 // pred_fallthru
            _
          %s308 = sld [smem:[#allocation5 + $0x2]]
          %s309 = scalar_lea.vmem %s1, %s308
          %s310 = scalar_lea.vmem [#allocation2], 2
          %s311 = scalar_lea.sflag [#allocation3], 2
          %p313 = scmp.lt.u32.totalorder 1, 8
          %p314 = pneg %p313
          // Predicated region
          $region131: #{tpu_custom_call.1} parent=69 // pred_check
            _
          $region132: #{tpu_custom_call.1} parent=69 // pred_check_branch
            %316 = sbr.rel (%p313) target = $region134
          $region133: #{tpu_custom_call.1} parent=69 // pred_region
            %s331 = sand.u32 1, 7
            %p332 = scmp.eq.s32.totalorder %s331, 0
            %p333 = pneg %p332
            // Predicated region
            $region146: #{tpu_custom_call.1} parent=133 // pred_check
              _
            $region147: #{tpu_custom_call.1} parent=133 // pred_check_branch
              %335 = sbr.rel (%p332) target = $region149
            $region148: #{tpu_custom_call.1} parent=133 // pred_region
              %s336 = sand.u32 1, 7
              %s337 = ssub.s32 1, %s336
              %s338 = scalar_lea.vmem %s309, %s337
              %s339 = ssub.s32 1, %s336
              %s340 = scalar_lea.vmem %s310, %s339 [#allocation2]
              %s341 = sshllo.u32 0, %s336
              loop: start=0, step=1, limit=1
              $region150: #{tpu_custom_call.1} parent=148 // loop_pre_header
                _
              $region151: #{tpu_custom_call.1} parent=148 // loop_header
                %s343 = sphi 0, %s347
                %p344 = scmp.ge.s32.totalorder %s343, 1
                %s348 = sphi %s338, %s338
                %s349 = sphi %s340, %s340
              $region152: #{tpu_custom_call.1} parent=148 // loop_header_branch
                %346 = sbr.rel (%p344) target = $region156
              $region153: #{tpu_custom_call.1} parent=148 // loop_body
                %v350 = vld [vmem:[%s348] sm:%s341]
                %351 = vst [vmem:[%s349] sm:%s341] %v350
              $region154: #{tpu_custom_call.1} parent=148 // loop_footer
                %s347 = sadd.s32 1, %s343
              $region155: #{tpu_custom_call.1} parent=148 // loop_footer_branch
                %342 = sbr.rel target = $region151
              $region156: #{tpu_custom_call.1} parent=148 // loop_exit
                _
            $region149: #{tpu_custom_call.1} parent=133 // pred_fallthru
              _
          $region134: #{tpu_custom_call.1} parent=69 // pred_fallthru
            _
          // Predicated region
          $region135: #{tpu_custom_call.1} parent=69 // pred_check
            %p317 = pneg %p313
          $region136: #{tpu_custom_call.1} parent=69 // pred_check_branch
            %319 = sbr.rel (%p317) target = $region138
          $region137: #{tpu_custom_call.1} parent=69 // pred_region
            %s320 = sshllo.u32 0, 1
            loop: start=0, step=1, limit=1
            $region139: #{tpu_custom_call.1} parent=137 // loop_pre_header
              _
            $region140: #{tpu_custom_call.1} parent=137 // loop_header
              %s322 = sphi 0, %s326
              %p323 = scmp.ge.s32.totalorder %s322, 1
              %s327 = sphi %s309, %s309
              %s328 = sphi %s310, %s310
            $region141: #{tpu_custom_call.1} parent=137 // loop_header_branch
              %325 = sbr.rel (%p323) target = $region145
            $region142: #{tpu_custom_call.1} parent=137 // loop_body
              %v329 = vld [vmem:[%s327] sm:%s320]
              %330 = vst [vmem:[%s328] sm:%s320] %v329
            $region143: #{tpu_custom_call.1} parent=137 // loop_footer
              %s326 = sadd.s32 1, %s322
            $region144: #{tpu_custom_call.1} parent=137 // loop_footer_branch
              %321 = sbr.rel target = $region140
            $region145: #{tpu_custom_call.1} parent=137 // loop_exit
              _
          $region138: #{tpu_custom_call.1} parent=69 // pred_fallthru
            _
          // Predicated region
          $region157: #{tpu_custom_call.1} parent=69 // pred_check
            _
          $region158: #{tpu_custom_call.1} parent=69 // pred_check_branch
            %354 = sbr.rel (0) target = $region160
          $region159: #{tpu_custom_call.1} parent=69 // pred_region
            %355 = vsyncadd %s311, 16
          $region160: #{tpu_custom_call.1} parent=69 // pred_fallthru
            _
          %s356 = sld [smem:[#allocation5 + $0x3]]
          %s357 = scalar_lea.vmem %s1, %s356
          %s358 = scalar_lea.vmem [#allocation2], 3
          %s359 = scalar_lea.sflag [#allocation3], 3
          %p361 = scmp.lt.u32.totalorder 1, 8
          %p362 = pneg %p361
          // Predicated region
          $region161: #{tpu_custom_call.1} parent=69 // pred_check
            _
          $region162: #{tpu_custom_call.1} parent=69 // pred_check_branch
            %364 = sbr.rel (%p361) target = $region164
          $region163: #{tpu_custom_call.1} parent=69 // pred_region
            %s379 = sand.u32 1, 7
            %p380 = scmp.eq.s32.totalorder %s379, 0
            %p381 = pneg %p380
            // Predicated region
            $region176: #{tpu_custom_call.1} parent=163 // pred_check
              _
            $region177: #{tpu_custom_call.1} parent=163 // pred_check_branch
              %383 = sbr.rel (%p380) target = $region179
            $region178: #{tpu_custom_call.1} parent=163 // pred_region
              %s384 = sand.u32 1, 7
              %s385 = ssub.s32 1, %s384
              %s386 = scalar_lea.vmem %s357, %s385
              %s387 = ssub.s32 1, %s384
              %s388 = scalar_lea.vmem %s358, %s387 [#allocation2]
              %s389 = sshllo.u32 0, %s384
              loop: start=0, step=1, limit=1
              $region180: #{tpu_custom_call.1} parent=178 // loop_pre_header
                _
              $region181: #{tpu_custom_call.1} parent=178 // loop_header
                %s391 = sphi 0, %s395
                %p392 = scmp.ge.s32.totalorder %s391, 1
                %s396 = sphi %s386, %s386
                %s397 = sphi %s388, %s388
              $region182: #{tpu_custom_call.1} parent=178 // loop_header_branch
                %394 = sbr.rel (%p392) target = $region186
              $region183: #{tpu_custom_call.1} parent=178 // loop_body
                %v398 = vld [vmem:[%s396] sm:%s389]
                %399 = vst [vmem:[%s397] sm:%s389] %v398
              $region184: #{tpu_custom_call.1} parent=178 // loop_footer
                %s395 = sadd.s32 1, %s391
              $region185: #{tpu_custom_call.1} parent=178 // loop_footer_branch
                %390 = sbr.rel target = $region181
              $region186: #{tpu_custom_call.1} parent=178 // loop_exit
                _
            $region179: #{tpu_custom_call.1} parent=163 // pred_fallthru
              _
          $region164: #{tpu_custom_call.1} parent=69 // pred_fallthru
            _
          // Predicated region
          $region165: #{tpu_custom_call.1} parent=69 // pred_check
            %p365 = pneg %p361
          $region166: #{tpu_custom_call.1} parent=69 // pred_check_branch
            %367 = sbr.rel (%p365) target = $region168
          $region167: #{tpu_custom_call.1} parent=69 // pred_region
            %s368 = sshllo.u32 0, 1
            loop: start=0, step=1, limit=1
            $region169: #{tpu_custom_call.1} parent=167 // loop_pre_header
              _
            $region170: #{tpu_custom_call.1} parent=167 // loop_header
              %s370 = sphi 0, %s374
              %p371 = scmp.ge.s32.totalorder %s370, 1
              %s375 = sphi %s357, %s357
              %s376 = sphi %s358, %s358
            $region171: #{tpu_custom_call.1} parent=167 // loop_header_branch
              %373 = sbr.rel (%p371) target = $region175
            $region172: #{tpu_custom_call.1} parent=167 // loop_body
              %v377 = vld [vmem:[%s375] sm:%s368]
              %378 = vst [vmem:[%s376] sm:%s368] %v377
            $region173: #{tpu_custom_call.1} parent=167 // loop_footer
              %s374 = sadd.s32 1, %s370
            $region174: #{tpu_custom_call.1} parent=167 // loop_footer_branch
              %369 = sbr.rel target = $region170
            $region175: #{tpu_custom_call.1} parent=167 // loop_exit
              _
          $region168: #{tpu_custom_call.1} parent=69 // pred_fallthru
            _
          // Predicated region
          $region187: #{tpu_custom_call.1} parent=69 // pred_check
            _
          $region188: #{tpu_custom_call.1} parent=69 // pred_check_branch
            %402 = sbr.rel (0) target = $region190
          $region189: #{tpu_custom_call.1} parent=69 // pred_region
            %403 = vsyncadd %s359, 16
          $region190: #{tpu_custom_call.1} parent=69 // pred_fallthru
            _
          %s404 = sld [smem:[#allocation5 + $0x4]]
          %s405 = scalar_lea.vmem %s1, %s404
          %s406 = scalar_lea.vmem [#allocation2], 4
          %s407 = scalar_lea.sflag [#allocation3], 4
          %p409 = scmp.lt.u32.totalorder 1, 8
          %p410 = pneg %p409
          // Predicated region
          $region191: #{tpu_custom_call.1} parent=69 // pred_check
            _
          $region192: #{tpu_custom_call.1} parent=69 // pred_check_branch
            %412 = sbr.rel (%p409) target = $region194
          $region193: #{tpu_custom_call.1} parent=69 // pred_region
            %s427 = sand.u32 1, 7
            %p428 = scmp.eq.s32.totalorder %s427, 0
            %p429 = pneg %p428
            // Predicated region
            $region206: #{tpu_custom_call.1} parent=193 // pred_check
              _
            $region207: #{tpu_custom_call.1} parent=193 // pred_check_branch
              %431 = sbr.rel (%p428) target = $region209
            $region208: #{tpu_custom_call.1} parent=193 // pred_region
              %s432 = sand.u32 1, 7
              %s433 = ssub.s32 1, %s432
              %s434 = scalar_lea.vmem %s405, %s433
              %s435 = ssub.s32 1, %s432
              %s436 = scalar_lea.vmem %s406, %s435 [#allocation2]
              %s437 = sshllo.u32 0, %s432
              loop: start=0, step=1, limit=1
              $region210: #{tpu_custom_call.1} parent=208 // loop_pre_header
                _
              $region211: #{tpu_custom_call.1} parent=208 // loop_header
                %s439 = sphi 0, %s443
                %p440 = scmp.ge.s32.totalorder %s439, 1
                %s444 = sphi %s434, %s434
                %s445 = sphi %s436, %s436
              $region212: #{tpu_custom_call.1} parent=208 // loop_header_branch
                %442 = sbr.rel (%p440) target = $region216
              $region213: #{tpu_custom_call.1} parent=208 // loop_body
                %v446 = vld [vmem:[%s444] sm:%s437]
                %447 = vst [vmem:[%s445] sm:%s437] %v446
              $region214: #{tpu_custom_call.1} parent=208 // loop_footer
                %s443 = sadd.s32 1, %s439
              $region215: #{tpu_custom_call.1} parent=208 // loop_footer_branch
                %438 = sbr.rel target = $region211
              $region216: #{tpu_custom_call.1} parent=208 // loop_exit
                _
            $region209: #{tpu_custom_call.1} parent=193 // pred_fallthru
              _
          $region194: #{tpu_custom_call.1} parent=69 // pred_fallthru
            _
          // Predicated region
          $region195: #{tpu_custom_call.1} parent=69 // pred_check
            %p413 = pneg %p409
          $region196: #{tpu_custom_call.1} parent=69 // pred_check_branch
            %415 = sbr.rel (%p413) target = $region198
          $region197: #{tpu_custom_call.1} parent=69 // pred_region
            %s416 = sshllo.u32 0, 1
            loop: start=0, step=1, limit=1
            $region199: #{tpu_custom_call.1} parent=197 // loop_pre_header
              _
            $region200: #{tpu_custom_call.1} parent=197 // loop_header
              %s418 = sphi 0, %s422
              %p419 = scmp.ge.s32.totalorder %s418, 1
              %s423 = sphi %s405, %s405
              %s424 = sphi %s406, %s406
            $region201: #{tpu_custom_call.1} parent=197 // loop_header_branch
              %421 = sbr.rel (%p419) target = $region205
            $region202: #{tpu_custom_call.1} parent=197 // loop_body
              %v425 = vld [vmem:[%s423] sm:%s416]
              %426 = vst [vmem:[%s424] sm:%s416] %v425
            $region203: #{tpu_custom_call.1} parent=197 // loop_footer
              %s422 = sadd.s32 1, %s418
            $region204: #{tpu_custom_call.1} parent=197 // loop_footer_branch
              %417 = sbr.rel target = $region200
            $region205: #{tpu_custom_call.1} parent=197 // loop_exit
              _
          $region198: #{tpu_custom_call.1} parent=69 // pred_fallthru
            _
          // Predicated region
          $region217: #{tpu_custom_call.1} parent=69 // pred_check
            _
          $region218: #{tpu_custom_call.1} parent=69 // pred_check_branch
            %450 = sbr.rel (0) target = $region220
          $region219: #{tpu_custom_call.1} parent=69 // pred_region
            %451 = vsyncadd %s407, 16
          $region220: #{tpu_custom_call.1} parent=69 // pred_fallthru
            _
          %s452 = sld [smem:[#allocation5 + $0x5]]
          %s453 = scalar_lea.vmem %s1, %s452
          %s454 = scalar_lea.vmem [#allocation2], 5
          %s455 = scalar_lea.sflag [#allocation3], 5
          %p457 = scmp.lt.u32.totalorder 1, 8
          %p458 = pneg %p457
          // Predicated region
          $region221: #{tpu_custom_call.1} parent=69 // pred_check
            _
          $region222: #{tpu_custom_call.1} parent=69 // pred_check_branch
            %460 = sbr.rel (%p457) target = $region224
          $region223: #{tpu_custom_call.1} parent=69 // pred_region
            %s475 = sand.u32 1, 7
            %p476 = scmp.eq.s32.totalorder %s475, 0
            %p477 = pneg %p476
            // Predicated region
            $region236: #{tpu_custom_call.1} parent=223 // pred_check
              _
            $region237: #{tpu_custom_call.1} parent=223 // pred_check_branch
              %479 = sbr.rel (%p476) target = $region239
            $region238: #{tpu_custom_call.1} parent=223 // pred_region
              %s480 = sand.u32 1, 7
              %s481 = ssub.s32 1, %s480
              %s482 = scalar_lea.vmem %s453, %s481
              %s483 = ssub.s32 1, %s480
              %s484 = scalar_lea.vmem %s454, %s483 [#allocation2]
              %s485 = sshllo.u32 0, %s480
              loop: start=0, step=1, limit=1
              $region240: #{tpu_custom_call.1} parent=238 // loop_pre_header
                _
              $region241: #{tpu_custom_call.1} parent=238 // loop_header
                %s487 = sphi 0, %s491
                %p488 = scmp.ge.s32.totalorder %s487, 1
                %s492 = sphi %s482, %s482
                %s493 = sphi %s484, %s484
              $region242: #{tpu_custom_call.1} parent=238 // loop_header_branch
                %490 = sbr.rel (%p488) target = $region246
              $region243: #{tpu_custom_call.1} parent=238 // loop_body
                %v494 = vld [vmem:[%s492] sm:%s485]
                %495 = vst [vmem:[%s493] sm:%s485] %v494
              $region244: #{tpu_custom_call.1} parent=238 // loop_footer
                %s491 = sadd.s32 1, %s487
              $region245: #{tpu_custom_call.1} parent=238 // loop_footer_branch
                %486 = sbr.rel target = $region241
              $region246: #{tpu_custom_call.1} parent=238 // loop_exit
                _
            $region239: #{tpu_custom_call.1} parent=223 // pred_fallthru
              _
          $region224: #{tpu_custom_call.1} parent=69 // pred_fallthru
            _
          // Predicated region
          $region225: #{tpu_custom_call.1} parent=69 // pred_check
            %p461 = pneg %p457
          $region226: #{tpu_custom_call.1} parent=69 // pred_check_branch
            %463 = sbr.rel (%p461) target = $region228
          $region227: #{tpu_custom_call.1} parent=69 // pred_region
            %s464 = sshllo.u32 0, 1
            loop: start=0, step=1, limit=1
            $region229: #{tpu_custom_call.1} parent=227 // loop_pre_header
              _
            $region230: #{tpu_custom_call.1} parent=227 // loop_header
              %s466 = sphi 0, %s470
              %p467 = scmp.ge.s32.totalorder %s466, 1
              %s471 = sphi %s453, %s453
              %s472 = sphi %s454, %s454
            $region231: #{tpu_custom_call.1} parent=227 // loop_header_branch
              %469 = sbr.rel (%p467) target = $region235
            $region232: #{tpu_custom_call.1} parent=227 // loop_body
              %v473 = vld [vmem:[%s471] sm:%s464]
              %474 = vst [vmem:[%s472] sm:%s464] %v473
            $region233: #{tpu_custom_call.1} parent=227 // loop_footer
              %s470 = sadd.s32 1, %s466
            $region234: #{tpu_custom_call.1} parent=227 // loop_footer_branch
              %465 = sbr.rel target = $region230
            $region235: #{tpu_custom_call.1} parent=227 // loop_exit
              _
          $region228: #{tpu_custom_call.1} parent=69 // pred_fallthru
            _
          // Predicated region
          $region247: #{tpu_custom_call.1} parent=69 // pred_check
            _
          $region248: #{tpu_custom_call.1} parent=69 // pred_check_branch
            %498 = sbr.rel (0) target = $region250
          $region249: #{tpu_custom_call.1} parent=69 // pred_region
            %499 = vsyncadd %s455, 16
          $region250: #{tpu_custom_call.1} parent=69 // pred_fallthru
            _
          %s500 = sld [smem:[#allocation5 + $0x6]]
          %s501 = scalar_lea.vmem %s1, %s500
          %s502 = scalar_lea.vmem [#allocation2], 6
          %s503 = scalar_lea.sflag [#allocation3], 6
          %p505 = scmp.lt.u32.totalorder 1, 8
          %p506 = pneg %p505
          // Predicated region
          $region251: #{tpu_custom_call.1} parent=69 // pred_check
            _
          $region252: #{tpu_custom_call.1} parent=69 // pred_check_branch
            %508 = sbr.rel (%p505) target = $region254
          $region253: #{tpu_custom_call.1} parent=69 // pred_region
            %s523 = sand.u32 1, 7
            %p524 = scmp.eq.s32.totalorder %s523, 0
            %p525 = pneg %p524
            // Predicated region
            $region266: #{tpu_custom_call.1} parent=253 // pred_check
              _
            $region267: #{tpu_custom_call.1} parent=253 // pred_check_branch
              %527 = sbr.rel (%p524) target = $region269
            $region268: #{tpu_custom_call.1} parent=253 // pred_region
              %s528 = sand.u32 1, 7
              %s529 = ssub.s32 1, %s528
              %s530 = scalar_lea.vmem %s501, %s529
              %s531 = ssub.s32 1, %s528
              %s532 = scalar_lea.vmem %s502, %s531 [#allocation2]
              %s533 = sshllo.u32 0, %s528
              loop: start=0, step=1, limit=1
              $region270: #{tpu_custom_call.1} parent=268 // loop_pre_header
                _
              $region271: #{tpu_custom_call.1} parent=268 // loop_header
                %s535 = sphi 0, %s539
                %p536 = scmp.ge.s32.totalorder %s535, 1
                %s540 = sphi %s530, %s530
                %s541 = sphi %s532, %s532
              $region272: #{tpu_custom_call.1} parent=268 // loop_header_branch
                %538 = sbr.rel (%p536) target = $region276
              $region273: #{tpu_custom_call.1} parent=268 // loop_body
                %v542 = vld [vmem:[%s540] sm:%s533]
                %543 = vst [vmem:[%s541] sm:%s533] %v542
              $region274: #{tpu_custom_call.1} parent=268 // loop_footer
                %s539 = sadd.s32 1, %s535
              $region275: #{tpu_custom_call.1} parent=268 // loop_footer_branch
                %534 = sbr.rel target = $region271
              $region276: #{tpu_custom_call.1} parent=268 // loop_exit
                _
            $region269: #{tpu_custom_call.1} parent=253 // pred_fallthru
              _
          $region254: #{tpu_custom_call.1} parent=69 // pred_fallthru
            _
          // Predicated region
          $region255: #{tpu_custom_call.1} parent=69 // pred_check
            %p509 = pneg %p505
          $region256: #{tpu_custom_call.1} parent=69 // pred_check_branch
            %511 = sbr.rel (%p509) target = $region258
          $region257: #{tpu_custom_call.1} parent=69 // pred_region
            %s512 = sshllo.u32 0, 1
            loop: start=0, step=1, limit=1
            $region259: #{tpu_custom_call.1} parent=257 // loop_pre_header
              _
            $region260: #{tpu_custom_call.1} parent=257 // loop_header
              %s514 = sphi 0, %s518
              %p515 = scmp.ge.s32.totalorder %s514, 1
              %s519 = sphi %s501, %s501
              %s520 = sphi %s502, %s502
            $region261: #{tpu_custom_call.1} parent=257 // loop_header_branch
              %517 = sbr.rel (%p515) target = $region265
            $region262: #{tpu_custom_call.1} parent=257 // loop_body
              %v521 = vld [vmem:[%s519] sm:%s512]
              %522 = vst [vmem:[%s520] sm:%s512] %v521
            $region263: #{tpu_custom_call.1} parent=257 // loop_footer
              %s518 = sadd.s32 1, %s514
            $region264: #{tpu_custom_call.1} parent=257 // loop_footer_branch
              %513 = sbr.rel target = $region260
            $region265: #{tpu_custom_call.1} parent=257 // loop_exit
              _
          $region258: #{tpu_custom_call.1} parent=69 // pred_fallthru
            _
          // Predicated region
          $region277: #{tpu_custom_call.1} parent=69 // pred_check
            _
          $region278: #{tpu_custom_call.1} parent=69 // pred_check_branch
            %546 = sbr.rel (0) target = $region280
          $region279: #{tpu_custom_call.1} parent=69 // pred_region
            %547 = vsyncadd %s503, 16
          $region280: #{tpu_custom_call.1} parent=69 // pred_fallthru
            _
          %s548 = sld [smem:[#allocation5 + $0x7]]
          %s549 = scalar_lea.vmem %s1, %s548
          %s550 = scalar_lea.vmem [#allocation2], 7
          %s551 = scalar_lea.sflag [#allocation3], 7
          %p553 = scmp.lt.u32.totalorder 1, 8
          %p554 = pneg %p553
          // Predicated region
          $region281: #{tpu_custom_call.1} parent=69 // pred_check
            _
          $region282: #{tpu_custom_call.1} parent=69 // pred_check_branch
            %556 = sbr.rel (%p553) target = $region284
          $region283: #{tpu_custom_call.1} parent=69 // pred_region
            %s571 = sand.u32 1, 7
            %p572 = scmp.eq.s32.totalorder %s571, 0
            %p573 = pneg %p572
            // Predicated region
            $region296: #{tpu_custom_call.1} parent=283 // pred_check
              _
            $region297: #{tpu_custom_call.1} parent=283 // pred_check_branch
              %575 = sbr.rel (%p572) target = $region299
            $region298: #{tpu_custom_call.1} parent=283 // pred_region
              %s576 = sand.u32 1, 7
              %s577 = ssub.s32 1, %s576
              %s578 = scalar_lea.vmem %s549, %s577
              %s579 = ssub.s32 1, %s576
              %s580 = scalar_lea.vmem %s550, %s579 [#allocation2]
              %s581 = sshllo.u32 0, %s576
              loop: start=0, step=1, limit=1
              $region300: #{tpu_custom_call.1} parent=298 // loop_pre_header
                _
              $region301: #{tpu_custom_call.1} parent=298 // loop_header
                %s583 = sphi 0, %s587
                %p584 = scmp.ge.s32.totalorder %s583, 1
                %s588 = sphi %s578, %s578
                %s589 = sphi %s580, %s580
              $region302: #{tpu_custom_call.1} parent=298 // loop_header_branch
                %586 = sbr.rel (%p584) target = $region306
              $region303: #{tpu_custom_call.1} parent=298 // loop_body
                %v590 = vld [vmem:[%s588] sm:%s581]
                %591 = vst [vmem:[%s589] sm:%s581] %v590
              $region304: #{tpu_custom_call.1} parent=298 // loop_footer
                %s587 = sadd.s32 1, %s583
              $region305: #{tpu_custom_call.1} parent=298 // loop_footer_branch
                %582 = sbr.rel target = $region301
              $region306: #{tpu_custom_call.1} parent=298 // loop_exit
                _
            $region299: #{tpu_custom_call.1} parent=283 // pred_fallthru
              _
          $region284: #{tpu_custom_call.1} parent=69 // pred_fallthru
            _
          // Predicated region
          $region285: #{tpu_custom_call.1} parent=69 // pred_check
            %p557 = pneg %p553
          $region286: #{tpu_custom_call.1} parent=69 // pred_check_branch
            %559 = sbr.rel (%p557) target = $region288
          $region287: #{tpu_custom_call.1} parent=69 // pred_region
            %s560 = sshllo.u32 0, 1
            loop: start=0, step=1, limit=1
            $region289: #{tpu_custom_call.1} parent=287 // loop_pre_header
              _
            $region290: #{tpu_custom_call.1} parent=287 // loop_header
              %s562 = sphi 0, %s566
              %p563 = scmp.ge.s32.totalorder %s562, 1
              %s567 = sphi %s549, %s549
              %s568 = sphi %s550, %s550
            $region291: #{tpu_custom_call.1} parent=287 // loop_header_branch
              %565 = sbr.rel (%p563) target = $region295
            $region292: #{tpu_custom_call.1} parent=287 // loop_body
              %v569 = vld [vmem:[%s567] sm:%s560]
              %570 = vst [vmem:[%s568] sm:%s560] %v569
            $region293: #{tpu_custom_call.1} parent=287 // loop_footer
              %s566 = sadd.s32 1, %s562
            $region294: #{tpu_custom_call.1} parent=287 // loop_footer_branch
              %561 = sbr.rel target = $region290
            $region295: #{tpu_custom_call.1} parent=287 // loop_exit
              _
          $region288: #{tpu_custom_call.1} parent=69 // pred_fallthru
            _
          // Predicated region
          $region307: #{tpu_custom_call.1} parent=69 // pred_check
            _
          $region308: #{tpu_custom_call.1} parent=69 // pred_check_branch
            %594 = sbr.rel (0) target = $region310
          $region309: #{tpu_custom_call.1} parent=69 // pred_region
            %595 = vsyncadd %s551, 16
          $region310: #{tpu_custom_call.1} parent=69 // pred_fallthru
            _
          %s596 = smul.u32 1, 1
          %s597 = sshll.u32 %s596, 4
          %598 = dma.done [#allocation3], %s597
          %s599 = sshll.u32 %s596, 4
          %600 = dma.done %s263, %s599
          %s601 = sshll.u32 %s596, 4
          %602 = dma.done %s311, %s601
          %s603 = sshll.u32 %s596, 4
          %604 = dma.done %s359, %s603
          %s605 = sshll.u32 %s596, 4
          %606 = dma.done %s407, %s605
          %s607 = sshll.u32 %s596, 4
          %608 = dma.done %s455, %s607
          %s609 = sshll.u32 %s596, 4
          %610 = dma.done %s503, %s609
          %s611 = sshll.u32 %s596, 4
          %612 = dma.done %s551, %s611
        $region70: #{tpu_custom_call.1} parent=61 // pred_fallthru
          _
        %v613 = vld [vmem:[#allocation2] sm:$0xff]
        %v614 = vld [vmem:[%s185] sm:$0xff]
        %v615 = vld [vmem:[%s185 + $0x8] sm:$0xff]
        %v616 = vld [vmem:[%s185 + $0x10] sm:$0xff]
        %v617 = vld [vmem:[%s185 + $0x18] sm:$0xff]
        %v618 = vld [vmem:[%s209] sm:$0x1]
        %v620 = vlaneseq
        %v621 = vshrl.u32 %v620, 7
        %v622 = vsub.s32 0, %v621
        %v623 = vrot.slane %v618, %v622
        %vm625 = vcmask 261120
        %v627 = vsel %vm625, %v613, 0
        %629 = vmatprep.subr.mxu0 0.0
        %630 = vmatpush1.msra.mxu0 %v614
        %631 = vmatprep.subr.mxu0 0.0
        %632 = vmatpush1.msra.mxu0 %v615
        %633 = vmatprep.subr.mxu0 0.0
        %634 = vmatpush1.msra.mxu0 %v616
        %635 = vmatprep.subr.mxu0 0.0
        %636 = vmatpush1.msra.mxu0 %v617
        %637 = vmatprep.subr.mxu0 0.0
        %638 = vmatpush1.msra.mxu0 0.0
        %639 = vmatprep.subr.mxu0 0.0
        %640 = vmatpush1.msra.mxu0 0.0
        %641 = vmatprep.subr.mxu0 0.0
        %642 = vmatpush1.msra.mxu0 0.0
        %643 = vmatprep.subr.mxu0 0.0
        %644 = vmatpush1.msra.mxu0 0.0
        %645 = vmatprep.subr.mxu0 0.0
        %646 = vmatpush1.msra.mxu0 0.0
        %647 = vmatprep.subr.mxu0 0.0
        %648 = vmatpush1.msra.mxu0 0.0
        %649 = vmatprep.subr.mxu0 0.0
        %650 = vmatpush1.msra.mxu0 0.0
        %651 = vmatprep.subr.mxu0 0.0
        %652 = vmatpush1.msra.mxu0 0.0
        %653 = vmatprep.subr.mxu0 0.0
        %654 = vmatpush1.msra.mxu0 0.0
        %655 = vmatprep.subr.mxu0 0.0
        %656 = vmatpush1.msra.mxu0 0.0
        %657 = vmatprep.subr.mxu0 0.0
        %658 = vmatpush1.msra.mxu0 0.0
        %659 = vmatprep.subr.mxu0 0.0
        %660 = vmatpush1.msra.mxu0 0.0
        %661 = vmatprep.subr.mxu0 0.0
        %662 = vmatpush1.msra.mxu0 0.0
        %663 = vmatprep.subr.mxu0 0.0
        %664 = vmatpush1.msra.mxu0 0.0
        %665 = vmatprep.subr.mxu0 0.0
        %666 = vmatpush1.msra.mxu0 0.0
        %667 = vmatprep.subr.mxu0 0.0
        %668 = vmatpush1.msra.mxu0 0.0
        %669 = vmatprep.subr.mxu0 0.0
        %670 = vmatpush1.msra.mxu0 0.0
        %671 = vmatprep.subr.mxu0 0.0
        %672 = vmatpush1.msra.mxu0 0.0
        %673 = vmatprep.subr.mxu0 0.0
        %674 = vmatpush1.msra.mxu0 0.0
        %675 = vmatprep.subr.mxu0 0.0
        %676 = vmatpush1.msra.mxu0 0.0
        %677 = vmatprep.subr.mxu0 0.0
        %678 = vmatpush1.msra.mxu0 0.0
        %679 = vmatprep.subr.mxu0 0.0
        %680 = vmatpush1.msra.mxu0 0.0
        %681 = vmatprep.subr.mxu0 0.0
        %682 = vmatpush1.msra.mxu0 0.0
        %683 = vmatprep.subr.mxu0 0.0
        %684 = vmatpush1.msra.mxu0 0.0
        %685 = vmatprep.subr.mxu0 0.0
        %686 = vmatpush1.msra.mxu0 0.0
        %687 = vmatprep.subr.mxu0 0.0
        %688 = vmatpush1.msra.mxu0 0.0
        %689 = vmatprep.subr.mxu0 0.0
        %690 = vmatpush1.msra.mxu0 0.0
        %691 = vmatprep.subr.mxu0 0.0
        %692 = vmatpush1.msra.mxu0 0.0
        %693 = vmatprep.mubr.f32.mxu0 0.0
        %694 = vmatmul.mubr.f32.gmra.mrb[0].mxu0 %v627
        %v695 = vpop.f32.mrb[0].mxu0
        %v696 = vadd.f32 %v623, %v695
        %v697 = vpop.f32.mrb[0].mxu0
        %698 = vdwg.mxu0
        %699 = vst [vmem:[%s206] sm:$0xff] %v696
        %s700 = sand.u32 %s84, 1
        %s701 = scalar_lea.sflag [#allocation8], %s700
        %s702 = sand.u32 %s84, 1
        %s703 = smul.addr %s702, 8
        %s704 = scalar_lea.vmem [#allocation7], %s703
        // Predicated region
        $region311: #{tpu_custom_call.1} parent=61 // pred_check
          %p705 = pneg %p94
        $region312: #{tpu_custom_call.1} parent=61 // pred_check_branch
          %707 = sbr.rel (%p705) target = $region314
        $region313: #{tpu_custom_call.1} parent=61 // pred_region
          %s709 = ssub.s32 128, 128
          %710 = vsyncadd %s701, %s709
          %s711 = smul.addr %s24, 128
          %s712 = scalar_lea.hbm %s4, %s711
          %s714 = sshll.u32 %s704, 4
          %s715 = int_to_ptr.vmem [resolvable:$true] %s714
          %717 = dma.vmem_to_hbm [thread:$0]  %s715, 128, %s712, %s701
        $region314: #{tpu_custom_call.1} parent=61 // pred_fallthru
          _
      $region62: #{tpu_custom_call.1} parent=5 // pred_fallthru
        _
      %p718 = scmp.le.s32.totalorder 2, %s19
      // Predicated region
      $region315: #{tpu_custom_call.1} parent=5 // pred_check
        %p719 = pneg %p718
      $region316: #{tpu_custom_call.1} parent=5 // pred_check_branch
        %721 = sbr.rel (%p719) target = $region318
      $region317: #{tpu_custom_call.1} parent=5 // pred_region
        %s722 = ssub.s32 %s19, 2
        // Predicated region
        $region319: #{tpu_custom_call.1} parent=317 // pred_check
          %p723 = pneg %p100
        $region320: #{tpu_custom_call.1} parent=317 // pred_check_branch
          %725 = sbr.rel (%p723) target = $region322
        $region321: #{tpu_custom_call.1} parent=317 // pred_region
          %s726 = sand.u32 %s85, 1
          %s727 = scalar_lea.sflag [#allocation8], %s726
          %s728 = sand.u32 %s85, 1
          %s729 = smul.addr %s728, 8
          %s730 = scalar_lea.vmem [#allocation7], %s729
          %731 = dma.done %s727, 128
        $region322: #{tpu_custom_call.1} parent=317 // pred_fallthru
          _
      $region318: #{tpu_custom_call.1} parent=5 // pred_fallthru
        _
    $region6: #{tpu_custom_call.1} parent=1 // loop_footer
      %s23 = sadd.s32 1, %s19
    $region7: #{tpu_custom_call.1} parent=1 // loop_footer_branch
      %18 = sbr.rel target = $region3
    $region8: #{tpu_custom_call.1} parent=1 // loop_exit
      _
    %732 = vsyncpa [#allocation8], 1
    %s733 = scalar_lea.sflag [#allocation8], 1
    %734 = vsyncpa %s733, 1
  %735 = vsyncmov [#allocation3]
  %s736 = vpop.sfrf %735
  %p737 = scmp.eq.s32.totalorder %s736, 0
  %p738 = pneg %p737
  %740 = shalt.err (%p738)
  %s741 = scalar_lea.sflag [#allocation3], 1
  %742 = vsyncmov %s741
  %s743 = vpop.sfrf %742
  %p744 = scmp.eq.s32.totalorder %s743, 0
  %p745 = pneg %p744
  %747 = shalt.err (%p745)
  %s748 = scalar_lea.sflag [#allocation3], 2
  %749 = vsyncmov %s748
  %s750 = vpop.sfrf %749
  %p751 = scmp.eq.s32.totalorder %s750, 0
  %p752 = pneg %p751
  %754 = shalt.err (%p752)
  %s755 = scalar_lea.sflag [#allocation3], 3
  %756 = vsyncmov %s755
  %s757 = vpop.sfrf %756
  %p758 = scmp.eq.s32.totalorder %s757, 0
  %p759 = pneg %p758
  %761 = shalt.err (%p759)
  %s762 = scalar_lea.sflag [#allocation3], 4
  %763 = vsyncmov %s762
  %s764 = vpop.sfrf %763
  %p765 = scmp.eq.s32.totalorder %s764, 0
  %p766 = pneg %p765
  %768 = shalt.err (%p766)
  %s769 = scalar_lea.sflag [#allocation3], 5
  %770 = vsyncmov %s769
  %s771 = vpop.sfrf %770
  %p772 = scmp.eq.s32.totalorder %s771, 0
  %p773 = pneg %p772
  %775 = shalt.err (%p773)
  %s776 = scalar_lea.sflag [#allocation3], 6
  %777 = vsyncmov %s776
  %s778 = vpop.sfrf %777
  %p779 = scmp.eq.s32.totalorder %s778, 0
  %p780 = pneg %p779
  %782 = shalt.err (%p780)
  %s783 = scalar_lea.sflag [#allocation3], 7
  %784 = vsyncmov %s783
  %s785 = vpop.sfrf %784
  %p786 = scmp.eq.s32.totalorder %s785, 0
  %p787 = pneg %p786
  %789 = shalt.err (%p787)

</llo_original>
